<compile_context>
chip_gen: v7x
topology: tpu7x:2x2x1
jax: 0.10.0
libtpu: 0.0.40
codegen_flags: <defaults>
</compile_context>

<pallas_src>
import functools

import jax
import jax.numpy as jnp
from jax.experimental import pallas as pl
from jax.experimental.pallas import tpu as pltpu


def _round_up(x, m):
    return (x + m - 1) // m * m


def _tpu_vmem_capacity_bytes():
    try:
        return int(pltpu.get_tpu_info().vmem_capacity_bytes)
    except Exception:
        return 64 * 1024 * 1024          # v7x floor; safe on every generation


def _pick_strip_h(H, W, cin_pad, vmem_cap):
    """Largest strip height that divides H, keeps the im2col scratch within budget,
    prefers >=2 strips (megacore) and lane-dense (multiple-of-128) output strips."""
    col_budget = max(vmem_cap // 8, 1 << 20)                  # col is single-buffered
    max_lanes = max(128, col_budget // (9 * cin_pad * 2))     # bf16 bytes per col element
    valid = [d for d in range(1, H + 1) if H % d == 0 and d * W <= max_lanes]
    if not valid:
        return 1
    multi = [d for d in valid if d < H] or valid
    aligned = [d for d in multi if (d * W) % 128 == 0]
    return max(aligned) if aligned else max(multi)


def conv_relu_kernel(x_ref, w_ref, b_ref, o_ref, col_ref, *,
                     W, strip_hw, lh_pad, KH, KW, pad, cin_pad):
    """One (image, H-strip) per grid step.

    x_ref:   (1, 1, cin_pad, lh_pad)   bf16  strip + halo rows, channels padded, flattened
    w_ref:   (Cout, KH*KW*cin_pad)     bf16  weights, contraction ordered (kh, kw, ci)
    b_ref:   (Cout, 1)                 f32   bias column (broadcasts along lanes)
    o_ref:   (1, Cout, strip_hw)       f32   flattened NCHW output strip
    col_ref: (KH*KW*cin_pad, strip_hw) bf16  im2col scratch (fully rewritten every step)
    """
    # Load the strip once; rotations below run on the well-supported 32-bit XLU path.
    xs = x_ref[0, 0].astype(jnp.float32)                       # (cin_pad, lh_pad)

    # Hoisted left/right zero-padding masks: one iota + one compare per dx value per step.
    wi = jax.lax.broadcasted_iota(jnp.int32, (cin_pad, strip_hw), 1) % W
    masks = {}
    for dx in range(-pad, pad + 1):
        if dx > 0:
            masks[dx] = wi < (W - dx)
        elif dx < 0:
            masks[dx] = wi >= (-dx)

    # Build the im2col matrix: tap (kh, kw) is a static lane rotation of the halo'd strip.
    # Top/bottom zero padding lives in the halo rows (prepared in the wrapper); only the
    # left/right row-wrap columns need the VPU mask.  All lanes/rows of col are written,
    # so no memset is needed.  (Derivation assumes stride=1, odd K, 'same' padding.)
    for kh in range(KH):
        for kw in range(KW):
            dx = kw - pad
            shift = kh * W + dx              # lane offset into the halo'd strip
            if shift == 0:
                v = xs
            else:
                v = pltpu.roll(xs, shift=(-shift) % lh_pad, axis=1)
            v = v[:, :strip_hw]
            if dx != 0:
                v = jnp.where(masks[dx], v, 0.0)
            t = kh * KW + kw
            col_ref[t * cin_pad:(t + 1) * cin_pad, :] = v.astype(col_ref.dtype)

    # Single MXU contraction with f32 accumulation; bias + ReLU fused at finalize.
    acc = jnp.dot(w_ref[...], col_ref[...], preferred_element_type=jnp.float32)
    acc = jnp.maximum(acc + b_ref[...], 0.0)
    o_ref[0] = acc.astype(o_ref.dtype)


def conv_relu(x, weight, bias, *, stride=1, padding=1):
    """x: (N, Cin, H, W); weight: (Cout, Cin, KH, KW); bias: (Cout,). NCHW in / NCHW out."""
    N, Cin, H, W = x.shape
    Cout, Cin_w, KH, KW = weight.shape
    assert Cin_w == Cin
    assert stride == 1 and 2 * padding == KH - 1 == KW - 1, (
        "this kernel implements the module defaults: stride=1, odd-K 'same' zero-pad conv")

    cin_pad = _round_up(Cin, 16)             # bf16 sublane tile -> aligned col slab stores
    vmem_cap = _tpu_vmem_capacity_bytes()
    strip_h = _pick_strip_h(H, W, cin_pad, vmem_cap)
    n_strips = H // strip_h
    strip_hw = strip_h * W
    lh = (strip_h + 2 * padding) * W          # strip + halo rows, flattened
    lh_pad = _round_up(lh, 128)               # lane-aligned rotate width
    kkc = KH * KW * cin_pad

    # ---- one-time parameter / layout prep (layout plumbing, fused by XLA) ----
    # weights (Cout, Cin, KH, KW) -> (Cout, KH*KW*cin_pad), contraction ordered (kh, kw, ci)
    w_mat = jnp.transpose(weight, (0, 2, 3, 1))
    w_mat = jnp.pad(w_mat, ((0, 0), (0, 0), (0, 0), (0, cin_pad - Cin)))
    w_mat = w_mat.reshape(Cout, kkc).astype(jnp.bfloat16)
    b_col = bias.reshape(Cout, 1).astype(jnp.float32)

    # x: bf16 cast, zero-pad channels to cin_pad and H by `padding` rows (the conv's zero
    # padding), then gather each strip together with its halo rows into a contiguous
    # lane-dense block so BlockSpec auto-pipelining can stream strips.
    xb = x.astype(jnp.bfloat16)
    xb = jnp.pad(xb, ((0, 0), (0, cin_pad - Cin), (padding, padding), (0, 0)))
    row_idx = (jnp.arange(n_strips)[:, None] * strip_h
               + jnp.arange(strip_h + 2 * padding)[None, :]).reshape(-1)
    xs = jnp.take(xb, row_idx, axis=2)        # (N, cin_pad, n_strips*(strip_h+2p), W)
    xs = xs.reshape(N, cin_pad, n_strips, strip_h + 2 * padding, W)
    xs = jnp.transpose(xs, (0, 2, 1, 3, 4)).reshape(N, n_strips, cin_pad, lh)
    if lh_pad != lh:
        xs = jnp.pad(xs, ((0, 0), (0, 0), (0, 0), (0, lh_pad - lh)))

    kernel = functools.partial(
        conv_relu_kernel, W=W, strip_hw=strip_hw, lh_pad=lh_pad,
        KH=KH, KW=KW, pad=padding, cin_pad=cin_pad)

    out_flat = pl.pallas_call(
        kernel,
        out_shape=jax.ShapeDtypeStruct((N, Cout, H * W), jnp.float32),
        grid_spec=pltpu.PrefetchScalarGridSpec(
            num_scalar_prefetch=0,
            grid=(N, n_strips),
            in_specs=[
                pl.BlockSpec((1, 1, cin_pad, lh_pad), lambda n, s: (n, s, 0, 0)),
                pl.BlockSpec((Cout, kkc), lambda n, s: (0, 0)),
                pl.BlockSpec((Cout, 1), lambda n, s: (0, 0)),
            ],
            out_specs=pl.BlockSpec((1, Cout, strip_hw), lambda n, s: (n, 0, s)),
            scratch_shapes=[pltpu.VMEM((kkc, strip_hw), jnp.bfloat16)],
        ),
        compiler_params=pltpu.CompilerParams(
            dimension_semantics=("parallel", "parallel"),
            vmem_limit_bytes=int(vmem_cap * 0.75),
        ),
    )(xs, w_mat, b_col)

    return out_flat.reshape(N, Cout, H, W)     # free, contiguous reshape back to NCHW


def conv_relu_reference(x_nchw, weight, bias, *, padding=1):
    out = jax.lax.conv_general_dilated(
        x_nchw, weight, window_strides=(1, 1),
        padding=((padding, padding), (padding, padding)),
        dimension_numbers=("NCHW", "OIHW", "NCHW"))
    return jnp.maximum(out + bias.reshape(1, -1, 1, 1), 0.0)


if __name__ == "__main__":
    key = jax.random.PRNGKey(0)
    k_x, k_w, k_b = jax.random.split(key, 3)

    N, Cin, Cout, H, W = 2, 4, 8, 16, 16
    KH = KW = 3

    x = jax.random.normal(k_x, (N, Cin, H, W), dtype=jnp.float32)
    # deterministic synthetic parameters (shapes match nn.Conv2d(in_ch=4, out_ch=8, k=3))
    fan_in = Cin * KH * KW
    bound = 1.0 / jnp.sqrt(fan_in)
    weight = jax.random.uniform(k_w, (Cout, Cin, KH, KW),
                                minval=-bound, maxval=bound, dtype=jnp.float32)
    bias = jax.random.uniform(k_b, (Cout,), minval=-bound, maxval=bound,
                              dtype=jnp.float32)

    out = jax.block_until_ready(conv_relu(x, weight, bias))
    assert out.shape == (N, Cout, H, W)

    # Kernel algorithm check (same bf16-rounded inputs, f32 accumulation): tight tolerance.
    ref_bf16 = conv_relu_reference(
        x.astype(jnp.bfloat16).astype(jnp.float32),
        weight.astype(jnp.bfloat16).astype(jnp.float32), bias)
    assert jnp.allclose(out, ref_bf16, atol=1e-2, rtol=1e-2)

    # Module-semantics check vs. the pure f32 reference: bf16-input tolerance.
    ref_f32 = conv_relu_reference(x, weight, bias)
    assert jnp.allclose(out, ref_f32, atol=6e-2, rtol=6e-2)

    print("KERNEL_OK")
</pallas_src>

<mosaic_0001>
module attributes {stable_mosaic.version = 11 : i64} {
  func.func @conv_relu_kernel(%arg0: i32, %arg1: i32, %arg2: memref<1x1x16x256xbf16, #tpu.memory_space<vmem>>, %arg3: memref<8x144xbf16, #tpu.memory_space<vmem>>, %arg4: memref<8x1xf32, #tpu.memory_space<vmem>>, %arg5: memref<1x8x128xf32, #tpu.memory_space<vmem>>, %arg6: memref<144x128xbf16, #tpu.memory_space<vmem>>) attributes {dimension_semantics = [#tpu.dimension_semantics<parallel>, #tpu.dimension_semantics<parallel>], iteration_bounds = array<i64: 2, 2>, scalar_prefetch = 0 : i64, scratch_operands = 1 : i64, tpu.core_type = #tpu.core_type<tc>, window_params = [{transform_indices = @transform_0, window_bounds = array<i64: 1, 1, 16, 256>}, {pipeline_mode = #tpu.pipeline_mode<synchronous>, transform_indices = @transform_1, window_bounds = array<i64: 8, 144>}, {pipeline_mode = #tpu.pipeline_mode<synchronous>, transform_indices = @transform_2, window_bounds = array<i64: 8, 1>}, {transform_indices = @transform_3, window_bounds = array<i64: 1, 8, 128>}]} {
    %c0 = arith.constant 0 : index
    %c0_0 = arith.constant 0 : index
    %c0_1 = arith.constant 0 : index
    %c0_2 = arith.constant 0 : index
    %0 = vector.load %arg2[%c0, %c0_0, %c0_1, %c0_2] : memref<1x1x16x256xbf16, #tpu.memory_space<vmem>>, vector<1x1x16x256xbf16>
    %1 = vector.shape_cast %0 : vector<1x1x16x256xbf16> to vector<16x256xbf16>
    %2 = arith.extf %1 : vector<16x256xbf16> to vector<16x256xf32>
    %3 = tpu.iota {dimensions = array<i32: 1>} : vector<16x128xi32>
    %c16_i32 = arith.constant 16 : i32
    %c0_i32 = arith.constant 0 : i32
    %4 = arith.cmpi eq, %c16_i32, %c0_i32 : i32
    %c1_i32 = arith.constant 1 : i32
    %5 = arith.select %4, %c1_i32, %c16_i32 : i32
    %6 = vector.broadcast %5 : i32 to vector<16x128xi32>
    %7 = arith.remsi %3, %6 : vector<16x128xi32>
    %c0_i32_3 = arith.constant 0 : i32
    %8 = vector.broadcast %c0_i32_3 : i32 to vector<16x128xi32>
    %9 = arith.cmpi ne, %7, %8 : vector<16x128xi32>
    %c0_i32_4 = arith.constant 0 : i32
    %10 = vector.broadcast %c0_i32_4 : i32 to vector<16x128xi32>
    %11 = arith.cmpi slt, %7, %10 : vector<16x128xi32>
    %c0_i32_5 = arith.constant 0 : i32
    %12 = arith.cmpi slt, %5, %c0_i32_5 : i32
    %13 = vector.broadcast %12 : i1 to vector<16x128xi1>
    %14 = vector.broadcast %13 : vector<16x128xi1> to vector<16x128xi1>
    %15 = arith.xori %11, %14 : vector<16x128xi1>
    %16 = arith.andi %15, %9 : vector<16x128xi1>
    %17 = vector.broadcast %5 : i32 to vector<16x128xi32>
    %18 = arith.addi %7, %17 : vector<16x128xi32>
    %19 = arith.select %16, %18, %7 : vector<16x128xi1>, vector<16x128xi32>
    %c1_i32_6 = arith.constant 1 : i32
    %20 = vector.broadcast %c1_i32_6 : i32 to vector<16x128xi32>
    %21 = arith.cmpi sge, %19, %20 : vector<16x128xi32>
    %c15_i32 = arith.constant 15 : i32
    %22 = vector.broadcast %c15_i32 : i32 to vector<16x128xi32>
    %23 = arith.cmpi slt, %19, %22 : vector<16x128xi32>
    %c1_i32_7 = arith.constant 1 : i32
    %24 = tpu.dynamic_rotate %2 by %c1_i32_7 dim 1 : vector<16x256xf32>, i32 -> vector<16x256xf32>
    %25 = vector.extract_strided_slice %24 {offsets = [0, 0], sizes = [16, 128], strides = [1, 1]} : vector<16x256xf32> to vector<16x128xf32>
    %cst = arith.constant 0.000000e+00 : f32
    %26 = vector.broadcast %cst : f32 to vector<16x128xf32>
    %27 = arith.select %21, %25, %26 : vector<16x128xi1>, vector<16x128xf32>
    %28 = arith.truncf %27 : vector<16x128xf32> to vector<16x128xbf16>
    %c0_8 = arith.constant 0 : index
    %c0_9 = arith.constant 0 : index
    %29 = vector.load %arg6[%c0_8, %c0_9] : memref<144x128xbf16, #tpu.memory_space<vmem>>, vector<16x128xbf16>
    tpu.vector_store %arg6[%c0_8, %c0_9], %28 {strides = array<i32>} : memref<144x128xbf16, #tpu.memory_space<vmem>>, vector<16x128xbf16>,
    %30 = vector.extract_strided_slice %2 {offsets = [0, 0], sizes = [16, 128], strides = [1, 1]} : vector<16x256xf32> to vector<16x128xf32>
    %31 = arith.truncf %30 : vector<16x128xf32> to vector<16x128xbf16>
    %c16 = arith.constant 16 : index
    %c0_10 = arith.constant 0 : index
    %32 = vector.load %arg6[%c16, %c0_10] : memref<144x128xbf16, #tpu.memory_space<vmem>>, vector<16x128xbf16>
    tpu.vector_store %arg6[%c16, %c0_10], %31 {strides = array<i32>} : memref<144x128xbf16, #tpu.memory_space<vmem>>, vector<16x128xbf16>,
    %c255_i32 = arith.constant 255 : i32
    %33 = tpu.dynamic_rotate %2 by %c255_i32 dim 1 : vector<16x256xf32>, i32 -> vector<16x256xf32>
    %34 = vector.extract_strided_slice %33 {offsets = [0, 0], sizes = [16, 128], strides = [1, 1]} : vector<16x256xf32> to vector<16x128xf32>
    %cst_11 = arith.constant 0.000000e+00 : f32
    %35 = vector.broadcast %cst_11 : f32 to vector<16x128xf32>
    %36 = arith.select %23, %34, %35 : vector<16x128xi1>, vector<16x128xf32>
    %37 = arith.truncf %36 : vector<16x128xf32> to vector<16x128xbf16>
    %c32 = arith.constant 32 : index
    %c0_12 = arith.constant 0 : index
    %38 = vector.load %arg6[%c32, %c0_12] : memref<144x128xbf16, #tpu.memory_space<vmem>>, vector<16x128xbf16>
    tpu.vector_store %arg6[%c32, %c0_12], %37 {strides = array<i32>} : memref<144x128xbf16, #tpu.memory_space<vmem>>, vector<16x128xbf16>,
    %c241_i32 = arith.constant 241 : i32
    %39 = tpu.dynamic_rotate %2 by %c241_i32 dim 1 : vector<16x256xf32>, i32 -> vector<16x256xf32>
    %40 = vector.extract_strided_slice %39 {offsets = [0, 0], sizes = [16, 128], strides = [1, 1]} : vector<16x256xf32> to vector<16x128xf32>
    %cst_13 = arith.constant 0.000000e+00 : f32
    %41 = vector.broadcast %cst_13 : f32 to vector<16x128xf32>
    %42 = arith.select %21, %40, %41 : vector<16x128xi1>, vector<16x128xf32>
    %43 = arith.truncf %42 : vector<16x128xf32> to vector<16x128xbf16>
    %c48 = arith.constant 48 : index
    %c0_14 = arith.constant 0 : index
    %44 = vector.load %arg6[%c48, %c0_14] : memref<144x128xbf16, #tpu.memory_space<vmem>>, vector<16x128xbf16>
    tpu.vector_store %arg6[%c48, %c0_14], %43 {strides = array<i32>} : memref<144x128xbf16, #tpu.memory_space<vmem>>, vector<16x128xbf16>,
    %c240_i32 = arith.constant 240 : i32
    %45 = tpu.dynamic_rotate %2 by %c240_i32 dim 1 : vector<16x256xf32>, i32 -> vector<16x256xf32>
    %46 = vector.extract_strided_slice %45 {offsets = [0, 0], sizes = [16, 128], strides = [1, 1]} : vector<16x256xf32> to vector<16x128xf32>
    %47 = arith.truncf %46 : vector<16x128xf32> to vector<16x128xbf16>
    %c64 = arith.constant 64 : index
    %c0_15 = arith.constant 0 : index
    %48 = vector.load %arg6[%c64, %c0_15] : memref<144x128xbf16, #tpu.memory_space<vmem>>, vector<16x128xbf16>
    tpu.vector_store %arg6[%c64, %c0_15], %47 {strides = array<i32>} : memref<144x128xbf16, #tpu.memory_space<vmem>>, vector<16x128xbf16>,
    %c239_i32 = arith.constant 239 : i32
    %49 = tpu.dynamic_rotate %2 by %c239_i32 dim 1 : vector<16x256xf32>, i32 -> vector<16x256xf32>
    %50 = vector.extract_strided_slice %49 {offsets = [0, 0], sizes = [16, 128], strides = [1, 1]} : vector<16x256xf32> to vector<16x128xf32>
    %cst_16 = arith.constant 0.000000e+00 : f32
    %51 = vector.broadcast %cst_16 : f32 to vector<16x128xf32>
    %52 = arith.select %23, %50, %51 : vector<16x128xi1>, vector<16x128xf32>
    %53 = arith.truncf %52 : vector<16x128xf32> to vector<16x128xbf16>
    %c80 = arith.constant 80 : index
    %c0_17 = arith.constant 0 : index
    %54 = vector.load %arg6[%c80, %c0_17] : memref<144x128xbf16, #tpu.memory_space<vmem>>, vector<16x128xbf16>
    tpu.vector_store %arg6[%c80, %c0_17], %53 {strides = array<i32>} : memref<144x128xbf16, #tpu.memory_space<vmem>>, vector<16x128xbf16>,
    %c225_i32 = arith.constant 225 : i32
    %55 = tpu.dynamic_rotate %2 by %c225_i32 dim 1 : vector<16x256xf32>, i32 -> vector<16x256xf32>
    %56 = vector.extract_strided_slice %55 {offsets = [0, 0], sizes = [16, 128], strides = [1, 1]} : vector<16x256xf32> to vector<16x128xf32>
    %cst_18 = arith.constant 0.000000e+00 : f32
    %57 = vector.broadcast %cst_18 : f32 to vector<16x128xf32>
    %58 = arith.select %21, %56, %57 : vector<16x128xi1>, vector<16x128xf32>
    %59 = arith.truncf %58 : vector<16x128xf32> to vector<16x128xbf16>
    %c96 = arith.constant 96 : index
    %c0_19 = arith.constant 0 : index
    %60 = vector.load %arg6[%c96, %c0_19] : memref<144x128xbf16, #tpu.memory_space<vmem>>, vector<16x128xbf16>
    tpu.vector_store %arg6[%c96, %c0_19], %59 {strides = array<i32>} : memref<144x128xbf16, #tpu.memory_space<vmem>>, vector<16x128xbf16>,
    %c224_i32 = arith.constant 224 : i32
    %61 = tpu.dynamic_rotate %2 by %c224_i32 dim 1 : vector<16x256xf32>, i32 -> vector<16x256xf32>
    %62 = vector.extract_strided_slice %61 {offsets = [0, 0], sizes = [16, 128], strides = [1, 1]} : vector<16x256xf32> to vector<16x128xf32>
    %63 = arith.truncf %62 : vector<16x128xf32> to vector<16x128xbf16>
    %c112 = arith.constant 112 : index
    %c0_20 = arith.constant 0 : index
    %64 = vector.load %arg6[%c112, %c0_20] : memref<144x128xbf16, #tpu.memory_space<vmem>>, vector<16x128xbf16>
    tpu.vector_store %arg6[%c112, %c0_20], %63 {strides = array<i32>} : memref<144x128xbf16, #tpu.memory_space<vmem>>, vector<16x128xbf16>,
    %c223_i32 = arith.constant 223 : i32
    %65 = tpu.dynamic_rotate %2 by %c223_i32 dim 1 : vector<16x256xf32>, i32 -> vector<16x256xf32>
    %66 = vector.extract_strided_slice %65 {offsets = [0, 0], sizes = [16, 128], strides = [1, 1]} : vector<16x256xf32> to vector<16x128xf32>
    %cst_21 = arith.constant 0.000000e+00 : f32
    %67 = vector.broadcast %cst_21 : f32 to vector<16x128xf32>
    %68 = arith.select %23, %66, %67 : vector<16x128xi1>, vector<16x128xf32>
    %69 = arith.truncf %68 : vector<16x128xf32> to vector<16x128xbf16>
    %c128 = arith.constant 128 : index
    %c0_22 = arith.constant 0 : index
    %70 = vector.load %arg6[%c128, %c0_22] : memref<144x128xbf16, #tpu.memory_space<vmem>>, vector<16x128xbf16>
    tpu.vector_store %arg6[%c128, %c0_22], %69 {strides = array<i32>} : memref<144x128xbf16, #tpu.memory_space<vmem>>, vector<16x128xbf16>,
    %c0_23 = arith.constant 0 : index
    %c0_24 = arith.constant 0 : index
    %71 = vector.load %arg3[%c0_23, %c0_24] : memref<8x144xbf16, #tpu.memory_space<vmem>>, vector<8x144xbf16>
    %c0_25 = arith.constant 0 : index
    %c0_26 = arith.constant 0 : index
    %72 = vector.load %arg6[%c0_25, %c0_26] : memref<144x128xbf16, #tpu.memory_space<vmem>>, vector<144x128xbf16>
    %cst_27 = arith.constant dense<0.000000e+00> : vector<8x128xf32>
    %73 = tpu.matmul %71, %72, %cst_27 {dimension_numbers = #tpu.dot_dimension_numbers<[1], [0], [0], [1], [0, 0, 1, 1], [], []>} : vector<8x144xbf16>, vector<144x128xbf16>, vector<8x128xf32> -> vector<8x128xf32>
    %c0_28 = arith.constant 0 : index
    %c0_29 = arith.constant 0 : index
    %74 = vector.load %arg4[%c0_28, %c0_29] : memref<8x1xf32, #tpu.memory_space<vmem>>, vector<8x1xf32>
    %75 = vector.broadcast %74 : vector<8x1xf32> to vector<8x128xf32>
    %76 = arith.addf %73, %75 : vector<8x128xf32>
    %cst_30 = arith.constant 0.000000e+00 : f32
    %77 = vector.broadcast %cst_30 : f32 to vector<8x128xf32>
    %78 = arith.maximumf %76, %77 : vector<8x128xf32>
    %c0_31 = arith.constant 0 : index
    %c0_32 = arith.constant 0 : index
    %c0_33 = arith.constant 0 : index
    %79 = vector.load %arg5[%c0_31, %c0_32, %c0_33] : memref<1x8x128xf32, #tpu.memory_space<vmem>>, vector<1x8x128xf32>
    %80 = vector.shape_cast %79 : vector<1x8x128xf32> to vector<8x128xf32>
    %81 = vector.shape_cast %78 : vector<8x128xf32> to vector<1x8x128xf32>
    tpu.vector_store %arg5[%c0_31, %c0_32, %c0_33], %81 {strides = array<i32>} : memref<1x8x128xf32, #tpu.memory_space<vmem>>, vector<1x8x128xf32>,
    return
  }
  func.func @transform_0(%arg0: i32, %arg1: i32) -> (i32, i32, i32, i32) {
    %c0_i32 = arith.constant 0 : i32
    %c0_i32_0 = arith.constant 0 : i32
    %c0_i32_1 = arith.constant 0 : i32
    return %arg0, %arg1, %c0_i32, %c0_i32_0 : i32, i32, i32, i32
  }
  func.func @transform_1(%arg0: i32, %arg1: i32) -> (i32, i32) {
    %c0_i32 = arith.constant 0 : i32
    %c0_i32_0 = arith.constant 0 : i32
    %c0_i32_1 = arith.constant 0 : i32
    return %c0_i32, %c0_i32_0 : i32, i32
  }
  func.func @transform_2(%arg0: i32, %arg1: i32) -> (i32, i32) {
    %c0_i32 = arith.constant 0 : i32
    %c0_i32_0 = arith.constant 0 : i32
    %c0_i32_1 = arith.constant 0 : i32
    return %c0_i32, %c0_i32_0 : i32, i32
  }
  func.func @transform_3(%arg0: i32, %arg1: i32) -> (i32, i32, i32) {
    %c0_i32 = arith.constant 0 : i32
    %c0_i32_0 = arith.constant 0 : i32
    return %arg0, %c0_i32, %arg1 : i32, i32, i32
  }
}

</mosaic_0001>

<llo_original>
// kernel: tpu_custom_call.1
$region0: #{tpu_custom_call.1}
  #allocation0 [shape = 'u32[]', space=smem, size = 0x4, offset = 0x4, fixed_abs, tag = 'smem constant byte address 0x4 - core index']
  #allocation1 [shape = 'u32[144,128]{1,0:T(1,128)}', space=vmem, size = 0x12000, scoped, tag = 'internal scratch']
  #allocation2 [shape = 'bf16[144,128]{1,0:T(16,128)(2,1)}', space=vmem, size = 0x9000, scoped, tag = 'scratch operand']
  %s0 = inlined_call_operand.hbm [shape: bf16[2,2,16,256], index: 0, kind: input, shape index: {}]
  %s1 = inlined_call_operand.vmem [shape: bf16[8,144], index: 1, kind: input, shape index: {}]
  %s2 = inlined_call_operand.vmem [shape: f32[8,1], index: 2, kind: input, shape index: {}]
  %s3 = inlined_call_operand.hbm [shape: f32[2,8,256], index: 3, kind: output, shape index: {}]
  %s4 = sld [smem:[#allocation0]]
  $region49: #{tpu_custom_call.1} parent=0
    _
  %s6 = ssub.s32 1, %s4
  %s7 = scalar_select 0, %s6, %s4
  $region1: #{tpu_custom_call.1} parent=0
    #allocation3 [shape = 'u8[16384]{0}', space=vmem, size = 0x4000, scoped, tag = 'input window, operand 0']
    #allocation4 [shape = 's32[2]{0}', space=sflag, size = 0x8, scoped, tag = 'scoped memory for tpu_custom_call.1']
    #allocation5 [shape = 's32[2]{0}', space=sflag, size = 0x8, scoped, tag = 'scoped memory for tpu_custom_call.1']
    #allocation6 [shape = 'u8[8192]{0}', space=vmem, size = 0x2000, scoped, tag = 'output window, operand 0']
    %8 = vsyncpa [#allocation4], 0
    %s9 = scalar_lea.sflag [#allocation4], 1
    %10 = vsyncpa %s9, 0
    %11 = vsyncpa [#allocation5], 0
    %s12 = scalar_lea.sflag [#allocation5], 1
    %13 = vsyncpa %s12, 0
    loop: start=0, step=1, limit=6
    $region2: #{tpu_custom_call.1} parent=1 // loop_pre_header
      _
    $region3: #{tpu_custom_call.1} parent=1 // loop_header
      %s15 = sphi 0, %s19
      %p16 = scmp.ge.s32.totalorder %s15, 6
      %s22 = sphi 0, %s34
      %s23 = sphi 0, %s30
      %s24 = sphi 0, %s22
      %s25 = sphi 0, %s23
      %s26 = sphi 0, %s24
      %s27 = sphi 0, %s25
      %s39 = sphi 0, %s41
      %s42 = sphi 0, %s39
      %s43 = sphi 0, %s42
      %s59 = sphi 0, %s43
      %s63 = sphi 0, %s63
      %s65 = sphi 0, %s63
      %s66 = sphi 0, %s65
      %s80 = sphi 0, %s66
      %s84 = sphi 0, %s84
      %s86 = sphi 0, %s84
      %s87 = sphi 0, %s86
      %s101 = sphi 0, %s87
      %s109 = sphi 0, %s111
      %s112 = sphi 0, %s109
      %s113 = sphi 0, %s112
      %s129 = sphi 0, %s113
    $region4: #{tpu_custom_call.1} parent=1 // loop_header_branch
      %18 = sbr.rel (%p16) target = $region8
    $region5: #{tpu_custom_call.1} parent=1 // loop_body
      %s20 = ssub.s32 %s15, 1
      %s21 = ssub.s32 %s15, 2
      %s28 = sadd.s32 1, %s23
      %p29 = scmp.ge.s32.totalorder %s28, 2
      %s30 = scalar_select %p29, 0, %s28
      %s31 = sadd.s32 1, %s22
      %s32 = scalar_select %p29, %s31, %s22
      %p33 = scmp.ge.s32.totalorder %s32, 2
      %s34 = scalar_select %p33, 0, %s32
      %s35 = ssub.s32 %s22, %s34
      %s36 = ssub.s32 %s23, %s30
      %s37 = sor.u32 %s35, %s36
      %p38 = scmp.eq.s32.totalorder %s37, 0
      %s40 = sadd.s32 %s39, 1
      %s41 = scalar_select %p38, %s39, %s40
      %p44 = pneg %p38
      %p45 = scmp.eq.s32.totalorder %s15, 3
      %p46 = por %p44, %p45
      %p47 = scmp.ne.s32.totalorder %s39, %s42
      %p48 = scmp.eq.s32.totalorder %s15, 0
      %p49 = por %p47, %p48
      %p50 = scmp.ne.s32.totalorder %s39, %s42
      %p51 = scmp.eq.s32.totalorder %s20, 3
      %p52 = por %p50, %p51
      %p53 = scmp.ne.s32.totalorder %s42, %s43
      %p54 = scmp.eq.s32.totalorder %s20, 0
      %p55 = por %p53, %p54
      %p56 = scmp.ne.s32.totalorder %s42, %s43
      %p57 = scmp.eq.s32.totalorder %s21, 3
      %p58 = por %p56, %p57
      %p60 = scmp.ne.s32.totalorder %s43, %s59
      %p61 = scmp.eq.s32.totalorder %s21, 0
      %p62 = por %p60, %p61
      %s64 = sadd.s32 %s63, 1
      %p67 = scmp.eq.s32.totalorder %s15, 3
      %p68 = scmp.ne.s32.totalorder %s63, %s65
      %p69 = scmp.eq.s32.totalorder %s15, 0
      %p70 = por %p68, %p69
      %p71 = scmp.ne.s32.totalorder %s63, %s65
      %p72 = scmp.eq.s32.totalorder %s20, 3
      %p73 = por %p71, %p72
      %p74 = scmp.ne.s32.totalorder %s65, %s66
      %p75 = scmp.eq.s32.totalorder %s20, 0
      %p76 = por %p74, %p75
      %p77 = scmp.ne.s32.totalorder %s65, %s66
      %p78 = scmp.eq.s32.totalorder %s21, 3
      %p79 = por %p77, %p78
      %p81 = scmp.ne.s32.totalorder %s66, %s80
      %p82 = scmp.eq.s32.totalorder %s21, 0
      %p83 = por %p81, %p82
      %s85 = sadd.s32 %s84, 1
      %p88 = scmp.eq.s32.totalorder %s15, 3
      %p89 = scmp.ne.s32.totalorder %s84, %s86
      %p90 = scmp.eq.s32.totalorder %s15, 0
      %p91 = por %p89, %p90
      %p92 = scmp.ne.s32.totalorder %s84, %s86
      %p93 = scmp.eq.s32.totalorder %s20, 3
      %p94 = por %p92, %p93
      %p95 = scmp.ne.s32.totalorder %s86, %s87
      %p96 = scmp.eq.s32.totalorder %s20, 0
      %p97 = por %p95, %p96
      %p98 = scmp.ne.s32.totalorder %s86, %s87
      %p99 = scmp.eq.s32.totalorder %s21, 3
      %p100 = por %p98, %p99
      %p102 = scmp.ne.s32.totalorder %s87, %s101
      %p103 = scmp.eq.s32.totalorder %s21, 0
      %p104 = por %p102, %p103
      %s105 = ssub.s32 %s22, %s34
      %s106 = ssub.s32 %s23, %s30
      %s107 = sor.u32 %s105, %s106
      %p108 = scmp.eq.s32.totalorder %s107, 0
      %s110 = sadd.s32 %s109, 1
      %s111 = scalar_select %p108, %s109, %s110
      %p114 = pneg %p108
      %p115 = scmp.eq.s32.totalorder %s15, 3
      %p116 = por %p114, %p115
      %p117 = scmp.ne.s32.totalorder %s109, %s112
      %p118 = scmp.eq.s32.totalorder %s15, 0
      %p119 = por %p117, %p118
      %p120 = scmp.ne.s32.totalorder %s109, %s112
      %p121 = scmp.eq.s32.totalorder %s20, 3
      %p122 = por %p120, %p121
      %p123 = scmp.ne.s32.totalorder %s112, %s113
      %p124 = scmp.eq.s32.totalorder %s20, 0
      %p125 = por %p123, %p124
      %p126 = scmp.ne.s32.totalorder %s112, %s113
      %p127 = scmp.eq.s32.totalorder %s21, 3
      %p128 = por %p126, %p127
      %p130 = scmp.ne.s32.totalorder %s113, %s129
      %p131 = scmp.eq.s32.totalorder %s21, 0
      %p132 = por %p130, %p131
      %p133 = scmp.le.s32.totalorder 1, %s15
      %p134 = scmp.lt.s32.totalorder %s15, 5
      %p135 = pnand %p133, %p134
      %p136 = pneg %p135
      // Predicated region
      $region9: #{tpu_custom_call.1} parent=5 // pred_check
        _
      $region10: #{tpu_custom_call.1} parent=5 // pred_check_branch
        %138 = sbr.rel (%p135) target = $region12
      $region11: #{tpu_custom_call.1} parent=5 // pred_region
        %s139 = ssub.s32 %s15, 1
        // Predicated region
        $region13: #{tpu_custom_call.1} parent=11 // pred_check
          %p140 = pneg %p76
        $region14: #{tpu_custom_call.1} parent=11 // pred_check_branch
          %142 = sbr.rel (%p140) target = $region16
        $region15: #{tpu_custom_call.1} parent=11 // pred_region
          _
        $region16: #{tpu_custom_call.1} parent=11 // pred_fallthru
          _
        // Predicated region
        $region17: #{tpu_custom_call.1} parent=11 // pred_check
          %p143 = pneg %p97
        $region18: #{tpu_custom_call.1} parent=11 // pred_check_branch
          %145 = sbr.rel (%p143) target = $region20
        $region19: #{tpu_custom_call.1} parent=11 // pred_region
          _
        $region20: #{tpu_custom_call.1} parent=11 // pred_fallthru
          _
      $region12: #{tpu_custom_call.1} parent=5 // pred_fallthru
        _
      %p146 = scmp.lt.s32.totalorder %s15, 4
      // Predicated region
      $region21: #{tpu_custom_call.1} parent=5 // pred_check
        %p147 = pneg %p146
      $region22: #{tpu_custom_call.1} parent=5 // pred_check_branch
        %149 = sbr.rel (%p147) target = $region24
      $region23: #{tpu_custom_call.1} parent=5 // pred_region
        // Predicated region
        $region25: #{tpu_custom_call.1} parent=23 // pred_check
          %p150 = pneg %p49
        $region26: #{tpu_custom_call.1} parent=23 // pred_check_branch
          %152 = sbr.rel (%p150) target = $region28
        $region27: #{tpu_custom_call.1} parent=23 // pred_region
          %s153 = sand.u32 %s39, 1
          %s154 = scalar_lea.sflag [#allocation4], %s153
          %s155 = sand.u32 %s39, 1
          %s156 = smul.addr %s155, 16
          %s157 = scalar_lea.vmem [#allocation3], %s156
          %s159 = ssub.s32 256, 256
          %160 = vsyncadd %s154, %s159
          %s161 = smul.addr %s23, 4
          %s162 = smul.addr %s22, 8
          %s163 = sadd.s32 %s161, %s162
          %s164 = smul.addr %s163, 64
          %s165 = scalar_lea.hbm %s0, %s164
          %s166 = sshll.u32 %s157, 4
          %s167 = int_to_ptr.vmem [resolvable:$true] %s166
          %172 = dma.hbm_to_vmem [thread:$0]  %s165, 256, %s167, %s154, 128, 128, 8
        $region28: #{tpu_custom_call.1} parent=23 // pred_fallthru
          _
      $region24: #{tpu_custom_call.1} parent=5 // pred_fallthru
        _
      %p173 = scmp.le.s32.totalorder 1, %s15
      %p174 = scmp.lt.s32.totalorder %s15, 5
      %p175 = pnand %p173, %p174
      %p176 = pneg %p175
      // Predicated region
      $region29: #{tpu_custom_call.1} parent=5 // pred_check
        _
      $region30: #{tpu_custom_call.1} parent=5 // pred_check_branch
        %178 = sbr.rel (%p175) target = $region32
      $region31: #{tpu_custom_call.1} parent=5 // pred_region
        %s179 = ssub.s32 %s15, 1
        %s180 = sand.u32 %s42, 1
        %s181 = scalar_lea.sflag [#allocation4], %s180
        %s182 = sand.u32 %s42, 1
        %s183 = smul.addr %s182, 16
        %s184 = scalar_lea.vmem [#allocation3], %s183
        // Predicated region
        $region33: #{tpu_custom_call.1} parent=31 // pred_check
          %p185 = pneg %p55
        $region34: #{tpu_custom_call.1} parent=31 // pred_check_branch
          %187 = sbr.rel (%p185) target = $region36
        $region35: #{tpu_custom_call.1} parent=31 // pred_region
          %188 = dma.done %s181, 256
        $region36: #{tpu_custom_call.1} parent=31 // pred_fallthru
          _
        %s189 = sand.u32 %s42, 1
        %s190 = scalar_lea.sflag [#allocation4], %s189
        %s191 = sand.u32 %s42, 1
        %s192 = smul.addr %s191, 16
        %s193 = scalar_lea.vmem [#allocation3], %s192
        %p194 = pneg %p55
        %p195 = pneg %p52
        %p196 = pneg %p76
        %p197 = pneg %p73
        %p198 = pneg %p97
        %p199 = pneg %p94
        %p200 = pneg %p125
        %p201 = pneg %p122
        %s202 = sand.u32 %s112, 1
        %s203 = scalar_lea.sflag [#allocation5], %s202
        %s204 = sand.u32 %s112, 1
        %s205 = smul.addr %s204, 8
        %s206 = scalar_lea.vmem [#allocation6], %s205
        %v208 = vld [vmem:[%s184] sm:$0xff]
        %v209 = vld [vmem:[%s184 + $0x8] sm:$0xff]
        %v210 = vunpack.c.l.bf16 %v208
        %v211 = vunpack.c.h.bf16 %v208
        %v212 = vunpack.c.l.bf16 %v209
        %v213 = vunpack.c.h.bf16 %v209
        %v214 = vlaneseq
        %v215 = vand.u32 %v214, 127
        %vm216 = vcmp.lt.s32.totalorder %v215, 0
        %v217 = vsub.s32 0, %v215
        %v218 = vsel %vm216, %v217, %v215
        %v219 = vshrl.u32 %v218, 4
        %v220 = vand.u32 %v218, 15
        %v221 = vsub.s32 0, %v220
        %v222 = vsel %vm216, %v221, %v220
        %vm223 = vcmp.ne.s32.totalorder %v222, 0
        %vm224 = vcmp.lt.s32.totalorder %v222, 0
        %vm225 = vmand %vm224, %vm223
        %v226 = vadd.s32 %v222, 16
        %v227 = vsel %vm225, %v226, %v222
        %vm228 = vcmp.ge.s32.totalorder %v227, 1
        %vm229 = vcmp.lt.s32.totalorder %v227, 15
        %230 = vrot.lane.b32.xlu0 %v210, 1
        %v231 = vpop.permute.xlu0 %230
        %232 = vrot.lane.b32.xlu0 %v212, 1
        %v233 = vpop.permute.xlu0 %232
        %234 = vrot.lane.b32.xlu0 %v211, 1
        %v235 = vpop.permute.xlu0 %234
        %236 = vrot.lane.b32.xlu0 %v213, 1
        %v237 = vpop.permute.xlu0 %236
        %vm238 = vcmp.lt.s32.totalorder %v215, 1
        %v239 = vsel %vm238, %v235, %v231
        %v240 = vsel %vm238, %v237, %v233
        %v241 = vsel %vm228, %v239, 0.0
        %v242 = vsel %vm228, %v240, 0.0
        %v243 = vpack.c.bf16 %v242, %v241
        %244 = vst [vmem:[#allocation2] sm:$0xff] %v243
        %v245 = vpack.c.bf16 %v212, %v210
        %246 = vst [vmem:[#allocation2 + $0x8] sm:$0xff] %v245
        %247 = vrot.lane.b32.xlu0 %v210, 127
        %v248 = vpop.permute.xlu0 %247
        %249 = vrot.lane.b32.xlu0 %v212, 127
        %v250 = vpop.permute.xlu0 %249
        %251 = vrot.lane.b32.xlu0 %v211, 127
        %v252 = vpop.permute.xlu0 %251
        %253 = vrot.lane.b32.xlu0 %v213, 127
        %v254 = vpop.permute.xlu0 %253
        %vm255 = vcmp.lt.s32.totalorder %v215, 127
        %v256 = vsel %vm255, %v248, %v252
        %v257 = vsel %vm255, %v250, %v254
        %v258 = vsel %vm229, %v256, 0.0
        %v259 = vsel %vm229, %v257, 0.0
        %v260 = vpack.c.bf16 %v259, %v258
        %261 = vst [vmem:[#allocation2 + $0x10] sm:$0xff] %v260
        %262 = vrot.lane.b32.xlu0 %v210, 113
        %v263 = vpop.permute.xlu0 %262
        %264 = vrot.lane.b32.xlu0 %v212, 113
        %v265 = vpop.permute.xlu0 %264
        %266 = vrot.lane.b32.xlu0 %v211, 113
        %v267 = vpop.permute.xlu0 %266
        %268 = vrot.lane.b32.xlu0 %v213, 113
        %v269 = vpop.permute.xlu0 %268
        %vm270 = vcmp.lt.s32.totalorder %v215, 113
        %v271 = vsel %vm270, %v263, %v267
        %v272 = vsel %vm270, %v265, %v269
        %v273 = vsel %vm228, %v271, 0.0
        %v274 = vsel %vm228, %v272, 0.0
        %v275 = vpack.c.bf16 %v274, %v273
        %276 = vst [vmem:[#allocation2 + $0x18] sm:$0xff] %v275
        %277 = vrot.lane.b32.xlu0 %v210, 112
        %v278 = vpop.permute.xlu0 %277
        %279 = vrot.lane.b32.xlu0 %v212, 112
        %v280 = vpop.permute.xlu0 %279
        %281 = vrot.lane.b32.xlu0 %v211, 112
        %v282 = vpop.permute.xlu0 %281
        %283 = vrot.lane.b32.xlu0 %v213, 112
        %v284 = vpop.permute.xlu0 %283
        %vm285 = vcmp.lt.s32.totalorder %v215, 112
        %v286 = vsel %vm285, %v278, %v282
        %v287 = vsel %vm285, %v280, %v284
        %v288 = vpack.c.bf16 %v287, %v286
        %289 = vst [vmem:[#allocation2 + $0x20] sm:$0xff] %v288
        %290 = vrot.lane.b32.xlu0 %v210, 111
        %v291 = vpop.permute.xlu0 %290
        %292 = vrot.lane.b32.xlu0 %v212, 111
        %v293 = vpop.permute.xlu0 %292
        %294 = vrot.lane.b32.xlu0 %v211, 111
        %v295 = vpop.permute.xlu0 %294
        %296 = vrot.lane.b32.xlu0 %v213, 111
        %v297 = vpop.permute.xlu0 %296
        %vm298 = vcmp.lt.s32.totalorder %v215, 111
        %v299 = vsel %vm298, %v291, %v295
        %v300 = vsel %vm298, %v293, %v297
        %v301 = vsel %vm229, %v299, 0.0
        %v302 = vsel %vm229, %v300, 0.0
        %v303 = vpack.c.bf16 %v302, %v301
        %304 = vst [vmem:[#allocation2 + $0x28] sm:$0xff] %v303
        %305 = vrot.lane.b32.xlu0 %v210, 97
        %v306 = vpop.permute.xlu0 %305
        %307 = vrot.lane.b32.xlu0 %v212, 97
        %v308 = vpop.permute.xlu0 %307
        %309 = vrot.lane.b32.xlu0 %v211, 97
        %v310 = vpop.permute.xlu0 %309
        %311 = vrot.lane.b32.xlu0 %v213, 97
        %v312 = vpop.permute.xlu0 %311
        %vm313 = vcmp.lt.s32.totalorder %v215, 97
        %v314 = vsel %vm313, %v306, %v310
        %v315 = vsel %vm313, %v308, %v312
        %v316 = vsel %vm228, %v314, 0.0
        %v317 = vsel %vm228, %v315, 0.0
        %v318 = vpack.c.bf16 %v317, %v316
        %319 = vst [vmem:[#allocation2 + $0x30] sm:$0xff] %v318
        %320 = vrot.lane.b32.xlu0 %v210, 96
        %v321 = vpop.permute.xlu0 %320
        %322 = vrot.lane.b32.xlu0 %v212, 96
        %v323 = vpop.permute.xlu0 %322
        %324 = vrot.lane.b32.xlu0 %v211, 96
        %v325 = vpop.permute.xlu0 %324
        %326 = vrot.lane.b32.xlu0 %v213, 96
        %v327 = vpop.permute.xlu0 %326
        %vm328 = vcmp.lt.s32.totalorder %v215, 96
        %v329 = vsel %vm328, %v321, %v325
        %v330 = vsel %vm328, %v323, %v327
        %v331 = vpack.c.bf16 %v330, %v329
        %332 = vst [vmem:[#allocation2 + $0x38] sm:$0xff] %v331
        %333 = vrot.lane.b32.xlu0 %v210, 95
        %v334 = vpop.permute.xlu0 %333
        %335 = vrot.lane.b32.xlu0 %v212, 95
        %v336 = vpop.permute.xlu0 %335
        %337 = vrot.lane.b32.xlu0 %v211, 95
        %v338 = vpop.permute.xlu0 %337
        %339 = vrot.lane.b32.xlu0 %v213, 95
        %v340 = vpop.permute.xlu0 %339
        %vm341 = vcmp.lt.s32.totalorder %v215, 95
        %v342 = vsel %vm341, %v334, %v338
        %v343 = vsel %vm341, %v336, %v340
        %v344 = vsel %vm229, %v342, 0.0
        %v345 = vsel %vm229, %v343, 0.0
        %v346 = vpack.c.bf16 %v345, %v344
        %347 = vst [vmem:[#allocation2 + $0x40] sm:$0xff] %v346
        %v348 = vld [vmem:[%s1] sm:$0xff]
        %v349 = vld [vmem:[#allocation2] sm:$0xff]
        %v350 = vld [vmem:[#allocation2 + $0x8] sm:$0xff]
        %v351 = vld [vmem:[#allocation2 + $0x10] sm:$0xff]
        %v352 = vld [vmem:[#allocation2 + $0x18] sm:$0xff]
        %v353 = vld [vmem:[#allocation2 + $0x20] sm:$0xff]
        %v354 = vld [vmem:[#allocation2 + $0x28] sm:$0xff]
        %v355 = vld [vmem:[#allocation2 + $0x30] sm:$0xff]
        %v356 = vld [vmem:[#allocation2 + $0x38] sm:$0xff]
        %v357 = vld [vmem:[#allocation2 + $0x40] sm:$0xff]
        %v358 = vld [vmem:[%s2] sm:$0xff]
        %360 = vset.pattern.permute.xlu0 0
        %361 = vperm.xlu0 %360, %v358
        %v362 = vpop.permute.xlu0 %361
        %v365 = vunpack.c.l.b16 %v348
        %v366 = vunpack.c.h.b16 %v348
        %v367 = vpack.c.b16 %v365, %v365
        %v368 = vpack.c.b16 %v366, %v366
        %vm370 = vcmask 130048
        %v372 = vsel %vm370, %v368, 0
        %374 = vmatprep.subr.bf16.mxu0 0
        %375 = vmatpush1.bf16.msra.mxu0 %v349
        %376 = vmatprep.subr.bf16.mxu0 0
        %377 = vmatpush1.bf16.msra.mxu0 %v350
        %378 = vmatprep.subr.bf16.mxu0 0
        %379 = vmatpush1.bf16.msra.mxu0 %v351
        %380 = vmatprep.subr.bf16.mxu0 0
        %381 = vmatpush1.bf16.msra.mxu0 %v352
        %382 = vmatprep.subr.bf16.mxu0 0
        %383 = vmatpush1.bf16.msra.mxu0 %v353
        %384 = vmatprep.subr.bf16.mxu0 0
        %385 = vmatpush1.bf16.msra.mxu0 %v354
        %386 = vmatprep.subr.bf16.mxu0 0
        %387 = vmatpush1.bf16.msra.mxu0 %v355
        %388 = vmatprep.subr.bf16.mxu0 0
        %389 = vmatpush1.bf16.msra.mxu0 %v356
        %390 = vmatprep.subr.bf16.mxu0 0
        %391 = vmatpush1.bf16.msra.mxu0 %v357
        %392 = vmatprep.subr.bf16.mxu0 0
        %393 = vmatpush1.bf16.msra.mxu0 0
        %394 = vmatprep.subr.bf16.mxu0 0
        %395 = vmatpush1.bf16.msra.mxu0 0
        %396 = vmatprep.subr.bf16.mxu0 0
        %397 = vmatpush1.bf16.msra.mxu0 0
        %398 = vmatprep.subr.bf16.mxu0 0
        %399 = vmatpush1.bf16.msra.mxu0 0
        %400 = vmatprep.subr.bf16.mxu0 0
        %401 = vmatpush1.bf16.msra.mxu0 0
        %402 = vmatprep.subr.bf16.mxu0 0
        %403 = vmatpush1.bf16.msra.mxu0 0
        %404 = vmatprep.subr.bf16.mxu0 0
        %405 = vmatpush1.bf16.msra.mxu0 0
        %406 = vmatprep.mubr.bf16.mxu0 %v372
        %407 = vmatmul.mubr.bf16.gmra.mrb[0].mxu0 %v367
        %v408 = vpop.f32.mrb[0].mxu0
        %v409 = vadd.f32 %v362, %v408
        %v410 = vpop.f32.mrb[0].mxu0
        %v411 = vpop.f32.mrb[0].mxu0
        %v412 = vpop.f32.mrb[0].mxu0
        %413 = vdwg.mxu0
        %v414 = vmax.f32 %v409, 0.0
        %415 = vst [vmem:[%s206] sm:$0xff] %v414
        %s416 = sand.u32 %s112, 1
        %s417 = scalar_lea.sflag [#allocation5], %s416
        %s418 = sand.u32 %s112, 1
        %s419 = smul.addr %s418, 8
        %s420 = scalar_lea.vmem [#allocation6], %s419
        // Predicated region
        $region37: #{tpu_custom_call.1} parent=31 // pred_check
          %p421 = pneg %p122
        $region38: #{tpu_custom_call.1} parent=31 // pred_check_branch
          %423 = sbr.rel (%p421) target = $region40
        $region39: #{tpu_custom_call.1} parent=31 // pred_region
          %s425 = ssub.s32 128, 128
          %426 = vsyncadd %s417, %s425
          %s427 = smul.addr %s24, 2
          %s428 = sadd.s32 %s25, %s427
          %s429 = smul.addr %s428, 128
          %s430 = scalar_lea.hbm %s3, %s429
          %s432 = sshll.u32 %s420, 4
          %s433 = int_to_ptr.vmem [resolvable:$true] %s432
          %435 = dma.vmem_to_hbm [thread:$0]  %s433, 128, %s430, %s417
        $region40: #{tpu_custom_call.1} parent=31 // pred_fallthru
          _
      $region32: #{tpu_custom_call.1} parent=5 // pred_fallthru
        _
      %p436 = scmp.le.s32.totalorder 2, %s15
      // Predicated region
      $region41: #{tpu_custom_call.1} parent=5 // pred_check
        %p437 = pneg %p436
      $region42: #{tpu_custom_call.1} parent=5 // pred_check_branch
        %439 = sbr.rel (%p437) target = $region44
      $region43: #{tpu_custom_call.1} parent=5 // pred_region
        %s440 = ssub.s32 %s15, 2
        // Predicated region
        $region45: #{tpu_custom_call.1} parent=43 // pred_check
          %p441 = pneg %p128
        $region46: #{tpu_custom_call.1} parent=43 // pred_check_branch
          %443 = sbr.rel (%p441) target = $region48
        $region47: #{tpu_custom_call.1} parent=43 // pred_region
          %s444 = sand.u32 %s113, 1
          %s445 = scalar_lea.sflag [#allocation5], %s444
          %s446 = sand.u32 %s113, 1
          %s447 = smul.addr %s446, 8
          %s448 = scalar_lea.vmem [#allocation6], %s447
          %449 = dma.done %s445, 128
        $region48: #{tpu_custom_call.1} parent=43 // pred_fallthru
          _
      $region44: #{tpu_custom_call.1} parent=5 // pred_fallthru
        _
    $region6: #{tpu_custom_call.1} parent=1 // loop_footer
      %s19 = sadd.s32 1, %s15
    $region7: #{tpu_custom_call.1} parent=1 // loop_footer_branch
      %14 = sbr.rel target = $region3
    $region8: #{tpu_custom_call.1} parent=1 // loop_exit
      _
    %450 = vsyncpa [#allocation4], 1
    %s451 = scalar_lea.sflag [#allocation4], 1
    %452 = vsyncpa %s451, 1
    %453 = vsyncpa [#allocation5], 1
    %s454 = scalar_lea.sflag [#allocation5], 1
    %455 = vsyncpa %s454, 1

</llo_original>
